<compile_context>
chip_gen: v7x
topology: tpu7x:2x2x1
jax: 0.10.0
libtpu: 0.0.40
codegen_flags: <defaults>
</compile_context>

<pallas_src>
import jax
import jax.numpy as jnp
from jax.experimental import pallas as pl
from jax.experimental.pallas import tpu as pltpu


# ----------------------------------------------------------------------------
# Coefficient setup (tiny plain-JAX glue, runs once per forward).
# ----------------------------------------------------------------------------
def newton_coeffs(nodes: jax.Array, values: jax.Array) -> jax.Array:
    """Divided-difference coefficients c s.t.
    p(x) = c[0] + c[1](x-x0) + c[2](x-x0)(x-x1) + ..."""
    n = int(nodes.shape[0])
    c = values.astype(jnp.float32)
    for j in range(1, n):
        upd = (c[j:] - c[j - 1 : n - 1]) / (nodes[j:] - nodes[: n - j])
        c = c.at[j:].set(upd)
    return c


def centered_monomial_coeffs(nodes: jax.Array, values: jax.Array,
                             center: float) -> jax.Array:
    """Monomial coefficients (ascending degree) of p in t = x - center."""
    n = int(nodes.shape[0])
    c = newton_coeffs(nodes, values)
    s = nodes.astype(jnp.float32) - jnp.float32(center)   # shifted nodes
    poly = jnp.zeros((n,), jnp.float32).at[0].set(c[n - 1])
    for k in range(n - 2, -1, -1):
        # poly(t) <- poly(t) * (t - s[k]) + c[k]
        shifted = jnp.concatenate([jnp.zeros((1,), jnp.float32), poly[: n - 1]])
        poly = shifted - s[k] * poly
        poly = poly.at[0].add(c[k])
    return poly


# ----------------------------------------------------------------------------
# Pallas kernel: elementwise centered-Horner evaluation (2 VALU ops / node).
# ----------------------------------------------------------------------------
def krogh_kernel(mono_ref, center_ref, x_ref, o_ref):
    # mono_ref:   (n,) f32 in SMEM (scalar-prefetched) — ascending-degree coeffs
    # center_ref: (1,) f32 in SMEM — domain midpoint
    # x_ref/o_ref: (tile_rows, 128) VMEM tiles, native dtype
    n = mono_ref.shape[0]
    t = x_ref[...].astype(jnp.float32) - center_ref[0]   # per-tile upcast
    p = jnp.full(t.shape, mono_ref[n - 1], dtype=jnp.float32)
    # Static unrolled loop over the small node count -> pure VPU ops.
    for k in range(n - 2, -1, -1):
        p = p * t + mono_ref[k]
    o_ref[...] = p.astype(o_ref.dtype)                    # store in native dtype


# ----------------------------------------------------------------------------
# Wrapper: flatten -> (pad to 128 if needed) -> pallas_call -> reshape.
# ----------------------------------------------------------------------------
def _round_up(a: int, b: int) -> int:
    return ((a + b - 1) // b) * b


def _cdiv(a: int, b: int) -> int:
    return -(-a // b)


def _target_tile_bytes() -> int:
    """~2 MiB tiles on v5 (HBM-bound, small default scoped VMEM), ~4 MiB on
    v6e / v7x (amortize per-grid-step overhead; fits their VMEM budgets)."""
    try:
        kind = jax.devices()[0].device_kind.lower()
    except Exception:
        kind = ""
    if "v5" in kind:
        return 2 * 1024 * 1024
    return 4 * 1024 * 1024


def _choose_tile_rows(rows: int, itemsize: int) -> int:
    if rows <= 8:
        return rows                     # single block == full array (allowed)
    max_tile_rows = max(8, (_target_tile_bytes() // (128 * itemsize)) // 8 * 8)
    # Aim for ~4 grid steps so both v7x TensorCores get work.
    desired = _round_up(max(8, _cdiv(rows, 4)), 8)
    tile_rows = min(max_tile_rows, desired)
    grid = _cdiv(rows, tile_rows)
    if grid > 1 and grid % 2 == 1:
        # Nudge to an even grid (balances the 2 v7x TCs) when possible.
        for g in (grid + 1, grid - 1):
            if g < 2:
                continue
            alt = _round_up(_cdiv(rows, g), 8)
            if 8 <= alt <= max_tile_rows and _cdiv(rows, alt) % 2 == 0:
                tile_rows = alt
                break
    return tile_rows


def krogh_forward(x: jax.Array, value: jax.Array, domain=(0.0, 1.0)) -> jax.Array:
    n = int(value.shape[0])
    nodes = jnp.linspace(domain[0], domain[1], n, dtype=jnp.float32)
    center = 0.5 * (float(domain[0]) + float(domain[1]))
    mono = centered_monomial_coeffs(nodes, value, center)
    center_arr = jnp.array([center], dtype=jnp.float32)

    orig_shape = x.shape
    orig_dtype = x.dtype
    flat = x.reshape(-1)                        # metadata only, no HBM copy
    total = int(flat.shape[0])

    LANES = 128
    itemsize = jnp.dtype(orig_dtype).itemsize

    # Pad only to a lane multiple (skipped for aligned sizes); the ragged
    # final *tile* is masked by Pallas, so no tile-multiple rounding / extra
    # HBM passes.
    pad = (-total) % LANES
    if pad:
        flat = jnp.pad(flat, (0, pad))          # padded tail evaluated & discarded
    rows = (total + pad) // LANES
    x2 = flat.reshape(rows, LANES)

    tile_rows = _choose_tile_rows(rows, itemsize)
    grid = _cdiv(rows, tile_rows)

    # Resident footprint: 2 buffers x (in + out) x tile, plus slack.
    tile_bytes = tile_rows * LANES * itemsize
    vmem_limit = 4 * tile_bytes + 8 * 1024 * 1024

    out2 = pl.pallas_call(
        krogh_kernel,
        out_shape=jax.ShapeDtypeStruct((rows, LANES), orig_dtype),
        grid_spec=pltpu.PrefetchScalarGridSpec(
            num_scalar_prefetch=2,              # mono coeffs, center -> SMEM
            grid=(grid,),
            in_specs=[
                pl.BlockSpec((tile_rows, LANES), lambda i, mono, ctr: (i, 0)),
            ],
            out_specs=pl.BlockSpec((tile_rows, LANES), lambda i, mono, ctr: (i, 0)),
        ),
        compiler_params=pltpu.CompilerParams(
            dimension_semantics=("parallel",),
            vmem_limit_bytes=vmem_limit,
        ),
    )(mono, center_arr, x2)

    out = out2.reshape(-1)
    if pad:
        out = out[:total]
    return out.reshape(orig_shape)


# ----------------------------------------------------------------------------
# Pure-JAX reference (independent Newton-form evaluation) for correctness.
# ----------------------------------------------------------------------------
def krogh_ref(x, value, domain=(0.0, 1.0)):
    n = int(value.shape[0])
    nodes = jnp.linspace(domain[0], domain[1], n, dtype=jnp.float32)
    c = newton_coeffs(nodes, value)
    xf = x.astype(jnp.float32)
    p = jnp.full_like(xf, c[n - 1])
    for k in range(n - 2, -1, -1):
        p = p * (xf - nodes[k]) + c[k]
    return p.astype(x.dtype)


if __name__ == "__main__":
    nodes_count = 8
    domain = (0.0, 1.0)

    # Parameter init mirroring Krogh.__init__ (linspace over domain) plus a
    # small deterministic perturbation so the polynomial is non-trivial.
    value = jnp.linspace(domain[0], domain[1], nodes_count, dtype=jnp.float32)
    value = value + 0.05 * jnp.sin(jnp.arange(nodes_count, dtype=jnp.float32))

    # Example input (NCHW, like the PyTorch module would receive).
    key = jax.random.PRNGKey(0)
    x = jax.random.uniform(
        key, (2, 4, 16, 16), dtype=jnp.float32, minval=domain[0], maxval=domain[1]
    )

    out = jax.block_until_ready(krogh_forward(x, value, domain))
    ref = krogh_ref(x, value, domain)
    assert out.shape == x.shape and out.dtype == x.dtype
    assert jnp.allclose(out, ref, atol=2e-4, rtol=2e-4), "mismatch vs reference"

    # Non-lane-aligned shape: exercises the minimal-pad + ragged-tile path.
    x_odd = jax.random.uniform(
        jax.random.PRNGKey(1), (3, 5, 7, 11), dtype=jnp.float32,
        minval=domain[0], maxval=domain[1],
    )
    out_odd = jax.block_until_ready(krogh_forward(x_odd, value, domain))
    assert jnp.allclose(out_odd, krogh_ref(x_odd, value, domain),
                        atol=2e-4, rtol=2e-4)

    print("KERNEL_OK")
</pallas_src>

<mosaic_0001>
module attributes {stable_mosaic.version = 11 : i64} {
  func.func @krogh_kernel(%arg0: i32, %arg1: memref<8xf32, #tpu.memory_space<smem>>, %arg2: memref<1xf32, #tpu.memory_space<smem>>, %arg3: memref<8x128xf32, #tpu.memory_space<vmem>>, %arg4: memref<8x128xf32, #tpu.memory_space<vmem>>) attributes {dimension_semantics = [#tpu.dimension_semantics<parallel>], iteration_bounds = array<i64: 2>, scalar_prefetch = 2 : i64, scratch_operands = 0 : i64, tpu.core_type = #tpu.core_type<tc>, window_params = [{transform_indices = @transform_0, window_bounds = array<i64: 8, 128>}, {transform_indices = @transform_1, window_bounds = array<i64: 8, 128>}]} {
    %c0 = arith.constant 0 : index
    %c0_0 = arith.constant 0 : index
    %0 = vector.load %arg3[%c0, %c0_0] : memref<8x128xf32, #tpu.memory_space<vmem>>, vector<8x128xf32>
    %c0_1 = arith.constant 0 : index
    %1 = memref.load %arg2[%c0_1] : memref<1xf32, #tpu.memory_space<smem>>
    %2 = vector.broadcast %1 : f32 to vector<8x128xf32>
    %3 = arith.subf %0, %2 : vector<8x128xf32>
    %c7 = arith.constant 7 : index
    %4 = memref.load %arg1[%c7] : memref<8xf32, #tpu.memory_space<smem>>
    %5 = vector.broadcast %4 : f32 to vector<8x128xf32>
    %6 = arith.mulf %5, %3 : vector<8x128xf32>
    %c6 = arith.constant 6 : index
    %7 = memref.load %arg1[%c6] : memref<8xf32, #tpu.memory_space<smem>>
    %8 = vector.broadcast %7 : f32 to vector<8x128xf32>
    %9 = arith.addf %6, %8 : vector<8x128xf32>
    %10 = arith.mulf %9, %3 : vector<8x128xf32>
    %c5 = arith.constant 5 : index
    %11 = memref.load %arg1[%c5] : memref<8xf32, #tpu.memory_space<smem>>
    %12 = vector.broadcast %11 : f32 to vector<8x128xf32>
    %13 = arith.addf %10, %12 : vector<8x128xf32>
    %14 = arith.mulf %13, %3 : vector<8x128xf32>
    %c4 = arith.constant 4 : index
    %15 = memref.load %arg1[%c4] : memref<8xf32, #tpu.memory_space<smem>>
    %16 = vector.broadcast %15 : f32 to vector<8x128xf32>
    %17 = arith.addf %14, %16 : vector<8x128xf32>
    %18 = arith.mulf %17, %3 : vector<8x128xf32>
    %c3 = arith.constant 3 : index
    %19 = memref.load %arg1[%c3] : memref<8xf32, #tpu.memory_space<smem>>
    %20 = vector.broadcast %19 : f32 to vector<8x128xf32>
    %21 = arith.addf %18, %20 : vector<8x128xf32>
    %22 = arith.mulf %21, %3 : vector<8x128xf32>
    %c2 = arith.constant 2 : index
    %23 = memref.load %arg1[%c2] : memref<8xf32, #tpu.memory_space<smem>>
    %24 = vector.broadcast %23 : f32 to vector<8x128xf32>
    %25 = arith.addf %22, %24 : vector<8x128xf32>
    %26 = arith.mulf %25, %3 : vector<8x128xf32>
    %c1 = arith.constant 1 : index
    %27 = memref.load %arg1[%c1] : memref<8xf32, #tpu.memory_space<smem>>
    %28 = vector.broadcast %27 : f32 to vector<8x128xf32>
    %29 = arith.addf %26, %28 : vector<8x128xf32>
    %30 = arith.mulf %29, %3 : vector<8x128xf32>
    %c0_2 = arith.constant 0 : index
    %31 = memref.load %arg1[%c0_2] : memref<8xf32, #tpu.memory_space<smem>>
    %32 = vector.broadcast %31 : f32 to vector<8x128xf32>
    %33 = arith.addf %30, %32 : vector<8x128xf32>
    %c0_3 = arith.constant 0 : index
    %c0_4 = arith.constant 0 : index
    %34 = vector.load %arg4[%c0_3, %c0_4] : memref<8x128xf32, #tpu.memory_space<vmem>>, vector<8x128xf32>
    tpu.vector_store %arg4[%c0_3, %c0_4], %33 {strides = array<i32>} : memref<8x128xf32, #tpu.memory_space<vmem>>, vector<8x128xf32>,
    return
  }
  func.func @transform_0(%arg0: i32, %arg1: memref<8xf32, #tpu.memory_space<smem>>, %arg2: memref<1xf32, #tpu.memory_space<smem>>) -> (i32, i32) {
    %c0_i32 = arith.constant 0 : i32
    %c0_i32_0 = arith.constant 0 : i32
    return %arg0, %c0_i32 : i32, i32
  }
  func.func @transform_1(%arg0: i32, %arg1: memref<8xf32, #tpu.memory_space<smem>>, %arg2: memref<1xf32, #tpu.memory_space<smem>>) -> (i32, i32) {
    %c0_i32 = arith.constant 0 : i32
    %c0_i32_0 = arith.constant 0 : i32
    return %arg0, %c0_i32 : i32, i32
  }
}

</mosaic_0001>

<llo_original>
// kernel: tpu_custom_call.1
$region0: #{tpu_custom_call.1}
  #allocation0 [shape = 'u32[]', space=smem, size = 0x4, offset = 0x4, fixed_abs, tag = 'smem constant byte address 0x4 - core index']
  #allocation1 [shape = 'u32[144,128]{1,0:T(1,128)}', space=vmem, size = 0x12000, scoped, tag = 'internal scratch']
  #allocation2 [shape = 's32[1]{0}', space=sflag, size = 0x4, scoped, tag = 'scoped memory for tpu_custom_call.1']
  #allocation3 [shape = 'u8[512]{0}', space=smem, size = 0x200, scoped, tag = 'prefetched SMEM operand 0']
  #allocation4 [shape = 'f32[1]{0:T(128)S(6)}', space=smem, size = 0x200, scoped, tag = 'prefetched SMEM operand 1']
  %s0 = inlined_call_operand.vmem [shape: f32[8], index: 0, kind: input, shape index: {}]
  %s1 = inlined_call_operand.<no memory space> [shape: f32[1], index: 1, kind: input, shape index: {}]
  %s2 = inlined_call_operand.hbm [shape: f32[16,128], index: 2, kind: input, shape index: {}]
  %s3 = inlined_call_operand.hbm [shape: f32[16,128], index: 3, kind: output, shape index: {}]
  %s4 = sld [smem:[#allocation0]]
  $region41: #{tpu_custom_call.1} parent=0
    _
  %s6 = ssub.s32 1, %s4
  %s7 = scalar_select 0, %s6, %s4
  %s8 = sshll.u32 %s0, 4
  %s9 = int_to_ptr.vmem [resolvable:$true] %s8
  %11 = dma.vmem_to_smem %s9, 16, [#allocation3], [#allocation2]
  %12 = sst [smem:[#allocation4]] %s1
  %13 = dma.done [#allocation2], 16
  %14 = sfence
  $region1: #{tpu_custom_call.1} parent=0
    #allocation5 [shape = 'u8[8192]{0}', space=vmem, size = 0x2000, scoped, tag = 'input window, operand 2']
    #allocation6 [shape = 's32[2]{0}', space=sflag, size = 0x8, scoped, tag = 'scoped memory for tpu_custom_call.1']
    #allocation7 [shape = 's32[2]{0}', space=sflag, size = 0x8, scoped, tag = 'scoped memory for tpu_custom_call.1']
    #allocation8 [shape = 'u8[8192]{0}', space=vmem, size = 0x2000, scoped, tag = 'output window, operand 0']
    %15 = vsyncpa [#allocation6], 0
    %s16 = scalar_lea.sflag [#allocation6], 1
    %17 = vsyncpa %s16, 0
    %18 = vsyncpa [#allocation7], 0
    %s19 = scalar_lea.sflag [#allocation7], 1
    %20 = vsyncpa %s19, 0
    loop: start=0, step=1, limit=4
    $region2: #{tpu_custom_call.1} parent=1 // loop_pre_header
      _
    $region3: #{tpu_custom_call.1} parent=1 // loop_header
      %s22 = sphi 0, %s26
      %p23 = scmp.ge.s32.totalorder %s22, 4
      %s32 = sphi 0, %s34
      %s35 = sphi 0, %s32
      %s36 = sphi 0, %s35
      %s52 = sphi 0, %s36
      %s58 = sphi 0, %s60
      %s61 = sphi 0, %s58
      %s62 = sphi 0, %s61
      %s78 = sphi 0, %s62
    $region4: #{tpu_custom_call.1} parent=1 // loop_header_branch
      %25 = sbr.rel (%p23) target = $region8
    $region5: #{tpu_custom_call.1} parent=1 // loop_body
      %s27 = ssub.s32 %s22, 1
      %s28 = ssub.s32 %s22, 2
      %s29 = sadd.s32 %s22, 1
      %s30 = ssub.s32 %s22, %s29
      %p31 = scmp.eq.s32.totalorder %s30, 0
      %s33 = sadd.s32 %s32, 1
      %s34 = scalar_select %p31, %s32, %s33
      %p37 = pneg %p31
      %p38 = scmp.eq.s32.totalorder %s22, 1
      %p39 = por %p37, %p38
      %p40 = scmp.ne.s32.totalorder %s32, %s35
      %p41 = scmp.eq.s32.totalorder %s22, 0
      %p42 = por %p40, %p41
      %p43 = scmp.ne.s32.totalorder %s32, %s35
      %p44 = scmp.eq.s32.totalorder %s27, 1
      %p45 = por %p43, %p44
      %p46 = scmp.ne.s32.totalorder %s35, %s36
      %p47 = scmp.eq.s32.totalorder %s27, 0
      %p48 = por %p46, %p47
      %p49 = scmp.ne.s32.totalorder %s35, %s36
      %p50 = scmp.eq.s32.totalorder %s28, 1
      %p51 = por %p49, %p50
      %p53 = scmp.ne.s32.totalorder %s36, %s52
      %p54 = scmp.eq.s32.totalorder %s28, 0
      %p55 = por %p53, %p54
      %s56 = ssub.s32 %s22, %s29
      %p57 = scmp.eq.s32.totalorder %s56, 0
      %s59 = sadd.s32 %s58, 1
      %s60 = scalar_select %p57, %s58, %s59
      %p63 = pneg %p57
      %p64 = scmp.eq.s32.totalorder %s22, 1
      %p65 = por %p63, %p64
      %p66 = scmp.ne.s32.totalorder %s58, %s61
      %p67 = scmp.eq.s32.totalorder %s22, 0
      %p68 = por %p66, %p67
      %p69 = scmp.ne.s32.totalorder %s58, %s61
      %p70 = scmp.eq.s32.totalorder %s27, 1
      %p71 = por %p69, %p70
      %p72 = scmp.ne.s32.totalorder %s61, %s62
      %p73 = scmp.eq.s32.totalorder %s27, 0
      %p74 = por %p72, %p73
      %p75 = scmp.ne.s32.totalorder %s61, %s62
      %p76 = scmp.eq.s32.totalorder %s28, 1
      %p77 = por %p75, %p76
      %p79 = scmp.ne.s32.totalorder %s62, %s78
      %p80 = scmp.eq.s32.totalorder %s28, 0
      %p81 = por %p79, %p80
      %p82 = scmp.le.s32.totalorder 1, %s22
      %p83 = scmp.lt.s32.totalorder %s22, 3
      %p84 = pnand %p82, %p83
      %p85 = pneg %p84
      // Predicated region
      $region9: #{tpu_custom_call.1} parent=5 // pred_check
        _
      $region10: #{tpu_custom_call.1} parent=5 // pred_check_branch
        %87 = sbr.rel (%p84) target = $region12
      $region11: #{tpu_custom_call.1} parent=5 // pred_region
        %s88 = ssub.s32 %s22, 1
      $region12: #{tpu_custom_call.1} parent=5 // pred_fallthru
        _
      %p89 = scmp.lt.s32.totalorder %s22, 2
      // Predicated region
      $region13: #{tpu_custom_call.1} parent=5 // pred_check
        %p90 = pneg %p89
      $region14: #{tpu_custom_call.1} parent=5 // pred_check_branch
        %92 = sbr.rel (%p90) target = $region16
      $region15: #{tpu_custom_call.1} parent=5 // pred_region
        // Predicated region
        $region17: #{tpu_custom_call.1} parent=15 // pred_check
          %p93 = pneg %p42
        $region18: #{tpu_custom_call.1} parent=15 // pred_check_branch
          %95 = sbr.rel (%p93) target = $region20
        $region19: #{tpu_custom_call.1} parent=15 // pred_region
          %s96 = sand.u32 %s32, 1
          %s97 = scalar_lea.sflag [#allocation6], %s96
          %s98 = sand.u32 %s32, 1
          %s99 = smul.addr %s98, 8
          %s100 = scalar_lea.vmem [#allocation5], %s99
          %s102 = ssub.s32 128, 128
          %103 = vsyncadd %s97, %s102
          %s104 = smul.addr %s22, 128
          %s105 = scalar_lea.hbm %s2, %s104
          %s107 = sshll.u32 %s100, 4
          %s108 = int_to_ptr.vmem [resolvable:$true] %s107
          %110 = dma.hbm_to_vmem [thread:$0]  %s105, 128, %s108, %s97
        $region20: #{tpu_custom_call.1} parent=15 // pred_fallthru
          _
      $region16: #{tpu_custom_call.1} parent=5 // pred_fallthru
        _
      %p111 = scmp.le.s32.totalorder 1, %s22
      %p112 = scmp.lt.s32.totalorder %s22, 3
      %p113 = pnand %p111, %p112
      %p114 = pneg %p113
      // Predicated region
      $region21: #{tpu_custom_call.1} parent=5 // pred_check
        _
      $region22: #{tpu_custom_call.1} parent=5 // pred_check_branch
        %116 = sbr.rel (%p113) target = $region24
      $region23: #{tpu_custom_call.1} parent=5 // pred_region
        %s117 = ssub.s32 %s22, 1
        %s118 = sand.u32 %s35, 1
        %s119 = scalar_lea.sflag [#allocation6], %s118
        %s120 = sand.u32 %s35, 1
        %s121 = smul.addr %s120, 8
        %s122 = scalar_lea.vmem [#allocation5], %s121
        // Predicated region
        $region25: #{tpu_custom_call.1} parent=23 // pred_check
          %p123 = pneg %p48
        $region26: #{tpu_custom_call.1} parent=23 // pred_check_branch
          %125 = sbr.rel (%p123) target = $region28
        $region27: #{tpu_custom_call.1} parent=23 // pred_region
          %126 = dma.done %s119, 128
        $region28: #{tpu_custom_call.1} parent=23 // pred_fallthru
          _
        %s127 = sand.u32 %s35, 1
        %s128 = scalar_lea.sflag [#allocation6], %s127
        %s129 = sand.u32 %s35, 1
        %s130 = smul.addr %s129, 8
        %s131 = scalar_lea.vmem [#allocation5], %s130
        %p132 = pneg %p48
        %p133 = pneg %p45
        %p134 = pneg %p74
        %p135 = pneg %p71
        %s136 = sand.u32 %s61, 1
        %s137 = scalar_lea.sflag [#allocation7], %s136
        %s138 = sand.u32 %s61, 1
        %s139 = smul.addr %s138, 8
        %s140 = scalar_lea.vmem [#allocation8], %s139
        %v141 = vld [vmem:[%s122] sm:$0xff]
        %s142 = sld [smem:[#allocation4]]
        %v143 = vstv %s142
        %v144 = vsub.f32 %v141, %v143
        %s145 = sld [smem:[#allocation3 + $0x7]]
        %v146 = vstv %s145
        %v147 = vmul.f32 %v146, %v144
        %s148 = sld [smem:[#allocation3 + $0x6]]
        %v149 = vstv %s148
        %v150 = vadd.f32 %v147, %v149
        %v151 = vmul.f32 %v150, %v144
        %s152 = sld [smem:[#allocation3 + $0x5]]
        %v153 = vstv %s152
        %v154 = vadd.f32 %v151, %v153
        %v155 = vmul.f32 %v154, %v144
        %s156 = sld [smem:[#allocation3 + $0x4]]
        %v157 = vstv %s156
        %v158 = vadd.f32 %v155, %v157
        %v159 = vmul.f32 %v158, %v144
        %s160 = sld [smem:[#allocation3 + $0x3]]
        %v161 = vstv %s160
        %v162 = vadd.f32 %v159, %v161
        %v163 = vmul.f32 %v162, %v144
        %s164 = sld [smem:[#allocation3 + $0x2]]
        %v165 = vstv %s164
        %v166 = vadd.f32 %v163, %v165
        %v167 = vmul.f32 %v166, %v144
        %s168 = sld [smem:[#allocation3 + $0x1]]
        %v169 = vstv %s168
        %v170 = vadd.f32 %v167, %v169
        %v171 = vmul.f32 %v170, %v144
        %s172 = sld [smem:[#allocation3]]
        %v173 = vstv %s172
        %v174 = vadd.f32 %v171, %v173
        %175 = vst [vmem:[%s140] sm:$0xff] %v174
        %s176 = sand.u32 %s61, 1
        %s177 = scalar_lea.sflag [#allocation7], %s176
        %s178 = sand.u32 %s61, 1
        %s179 = smul.addr %s178, 8
        %s180 = scalar_lea.vmem [#allocation8], %s179
        // Predicated region
        $region29: #{tpu_custom_call.1} parent=23 // pred_check
          %p181 = pneg %p71
        $region30: #{tpu_custom_call.1} parent=23 // pred_check_branch
          %183 = sbr.rel (%p181) target = $region32
        $region31: #{tpu_custom_call.1} parent=23 // pred_region
          %s185 = ssub.s32 128, 128
          %186 = vsyncadd %s177, %s185
          %s187 = smul.addr %s27, 128
          %s188 = scalar_lea.hbm %s3, %s187
          %s190 = sshll.u32 %s180, 4
          %s191 = int_to_ptr.vmem [resolvable:$true] %s190
          %193 = dma.vmem_to_hbm [thread:$0]  %s191, 128, %s188, %s177
        $region32: #{tpu_custom_call.1} parent=23 // pred_fallthru
          _
      $region24: #{tpu_custom_call.1} parent=5 // pred_fallthru
        _
      %p194 = scmp.le.s32.totalorder 2, %s22
      // Predicated region
      $region33: #{tpu_custom_call.1} parent=5 // pred_check
        %p195 = pneg %p194
      $region34: #{tpu_custom_call.1} parent=5 // pred_check_branch
        %197 = sbr.rel (%p195) target = $region36
      $region35: #{tpu_custom_call.1} parent=5 // pred_region
        %s198 = ssub.s32 %s22, 2
        // Predicated region
        $region37: #{tpu_custom_call.1} parent=35 // pred_check
          %p199 = pneg %p77
        $region38: #{tpu_custom_call.1} parent=35 // pred_check_branch
          %201 = sbr.rel (%p199) target = $region40
        $region39: #{tpu_custom_call.1} parent=35 // pred_region
          %s202 = sand.u32 %s62, 1
          %s203 = scalar_lea.sflag [#allocation7], %s202
          %s204 = sand.u32 %s62, 1
          %s205 = smul.addr %s204, 8
          %s206 = scalar_lea.vmem [#allocation8], %s205
          %207 = dma.done %s203, 128
        $region40: #{tpu_custom_call.1} parent=35 // pred_fallthru
          _
      $region36: #{tpu_custom_call.1} parent=5 // pred_fallthru
        _
    $region6: #{tpu_custom_call.1} parent=1 // loop_footer
      %s26 = sadd.s32 1, %s22
    $region7: #{tpu_custom_call.1} parent=1 // loop_footer_branch
      %21 = sbr.rel target = $region3
    $region8: #{tpu_custom_call.1} parent=1 // loop_exit
      _
    %208 = vsyncpa [#allocation6], 1
    %s209 = scalar_lea.sflag [#allocation6], 1
    %210 = vsyncpa %s209, 1
    %211 = vsyncpa [#allocation7], 1
    %s212 = scalar_lea.sflag [#allocation7], 1
    %213 = vsyncpa %s212, 1

</llo_original>
